<compile_context>
chip_gen: v5e
topology: v5e:2x2
jax: 0.10.0
libtpu: 0.0.40
codegen_flags: <defaults>
</compile_context>

<pallas_src>
import functools
import math

import jax
import jax.numpy as jnp
from jax.experimental import pallas as pl
from jax.experimental.pallas import tpu as pltpu


# ----------------------------- device budgeting ------------------------------


@functools.lru_cache(maxsize=1)
def _vmem_limit_bytes() -> int:
    """~75% of physical VMEM, capped at 100 MiB (96 MiB v5e/v6e, 48 MiB v7x)."""
    cap = 64 * 1024 * 1024
    try:
        info = pltpu.get_tpu_info()
        cap = int(getattr(info, "vmem_capacity_bytes", cap))
    except Exception:
        pass
    return min((cap * 3) // 4, 100 * 1024 * 1024)


def _choose_chunk(n: int, target: int = 512, align: int = 128) -> int:
    """Largest chunk <= target that divides n and is a multiple of `align`."""
    if n <= target:
        return n
    for c in range(target, align - 1, -align):
        if n % c == 0:
            return c
    return n


def _heads_per_block(nh: int, dh: int, hidden: int) -> int:
    """Heads per attention grid step, chosen so the block lane width (hp*dh)
    is either the full hidden size or a multiple of 128 (lane-dense)."""
    if hidden <= 128:
        return nh
    if dh % 128 == 0:
        return 1
    if 128 % dh == 0:
        hp = 128 // dh
        if nh % hp == 0:
            return hp
    return 1


# ----------------------------- kernels --------------------------------------


def _qkv_kernel(x_ref, w_ref, b_ref, q_out, k_out, v_out):
    # One lane-dense (tm, H) @ (H, 3H) MXU matmul; outputs sliced statically.
    h = jnp.dot(x_ref[...], w_ref[...], preferred_element_type=jnp.float32)
    h = h + b_ref[...].astype(jnp.float32)
    n = q_out.shape[-1]
    q_out[...] = h[:, :n].astype(q_out.dtype)
    k_out[...] = h[:, n:2 * n].astype(k_out.dtype)
    v_out[...] = h[:, 2 * n:].astype(v_out.dtype)


def _make_attention_kernel(scale: float, dh: int, hp: int):
    def kernel(q_ref, k_ref, v_ref, mask_ref, o_ref):
        # q/k/v blocks are (S, hp*dh): hp heads sliced out of the (M, H) tensors.
        m = mask_ref[...].astype(jnp.float32)            # (1, S) additive mask

        for j in range(hp):                              # small static unroll
            lo, hi = j * dh, (j + 1) * dh
            q = q_ref[:, lo:hi]                          # (S, dh)
            k = k_ref[:, lo:hi]                          # (S, dh)
            v = v_ref[:, lo:hi]                          # (S, dh)

            # scores = q @ k.T / sqrt(dh)  (contract head dim, no transpose)
            scores = jax.lax.dot_general(
                q, k, dimension_numbers=(((1,), (1,)), ((), ())),
                preferred_element_type=jnp.float32) * scale
            scores = scores + m                          # broadcast over query rows

            # numerically-stable softmax (dropout = identity in eval mode)
            scores = scores - jnp.max(scores, axis=-1, keepdims=True)
            p = jnp.exp(scores)
            p = p * pl.reciprocal(jnp.sum(p, axis=-1, keepdims=True), approx=True)

            # keep V in native dtype; f32 accumulation via preferred_element_type
            ctx = jnp.dot(p.astype(v_ref.dtype), v,
                          preferred_element_type=jnp.float32)
            o_ref[:, lo:hi] = ctx.astype(o_ref.dtype)

    return kernel


def _make_linear_residual_ln_kernel(eps: float):
    def kernel(x_ref, w_ref, b_ref, res_ref, gamma_ref, beta_ref, o_ref):
        h = jnp.dot(x_ref[...], w_ref[...], preferred_element_type=jnp.float32)
        h = h + b_ref[...].astype(jnp.float32)
        # dropout: identity in eval mode
        h = h + res_ref[...].astype(jnp.float32)
        mean = jnp.mean(h, axis=-1, keepdims=True)
        c = h - mean
        var = jnp.mean(c * c, axis=-1, keepdims=True)
        out = c * jax.lax.rsqrt(var + eps) * gamma_ref[...].astype(jnp.float32) \
            + beta_ref[...].astype(jnp.float32)
        o_ref[...] = out.astype(o_ref.dtype)

    return kernel


def _make_mlp_kernel(eps: float):
    """Fused BertIntermediate + BertOutput (+ residual + LayerNorm).

    Grid axis 1 chunks the intermediate (4H) dimension; the (M, 4H) activation
    stays in VMEM and is never written to HBM.
    """
    def kernel(x_ref, w1_ref, b1_ref, w2_ref, b2_ref, gamma_ref, beta_ref,
               o_ref, acc_ref):
        kstep = pl.program_id(1)

        @pl.when(kstep == 0)
        def _():
            acc_ref[...] = jnp.zeros_like(acc_ref)

        h = jnp.dot(x_ref[...], w1_ref[...], preferred_element_type=jnp.float32)
        h = h + b1_ref[...].astype(jnp.float32)
        # TODO(synk): HF BERT's default "gelu" is erf-based; tanh-approx GELU is
        # used here (EUP-friendly, guaranteed Mosaic lowering). Reference matches.
        h = jax.nn.gelu(h, approximate=True)
        acc_ref[...] += jnp.dot(h.astype(w2_ref.dtype), w2_ref[...],
                                preferred_element_type=jnp.float32)

        @pl.when(kstep == pl.num_programs(1) - 1)
        def _():
            # dropout: identity in eval mode; residual is x itself (attention out)
            out = acc_ref[...] + b2_ref[...].astype(jnp.float32) \
                + x_ref[...].astype(jnp.float32)
            mean = jnp.mean(out, axis=-1, keepdims=True)
            c = out - mean
            var = jnp.mean(c * c, axis=-1, keepdims=True)
            out = c * jax.lax.rsqrt(var + eps) * gamma_ref[...].astype(jnp.float32) \
                + beta_ref[...].astype(jnp.float32)
            o_ref[...] = out.astype(o_ref.dtype)

    return kernel


# ----------------------------- wrappers --------------------------------------


def _qkv_proj(x2, w_qkv_t, b_qkv, tm, params):
    M, H = x2.shape
    out_sds = jax.ShapeDtypeStruct((M, H), x2.dtype)
    o_spec = pl.BlockSpec((tm, H), lambda i: (i, 0))
    return pl.pallas_call(
        _qkv_kernel,
        out_shape=(out_sds, out_sds, out_sds),
        grid=(pl.cdiv(M, tm),),
        in_specs=[pl.BlockSpec((tm, H), lambda i: (i, 0)),       # streaming x
                  pl.BlockSpec((H, 3 * H), lambda i: (0, 0)),    # resident W_qkv
                  pl.BlockSpec((1, 3 * H), lambda i: (0, 0))],   # resident bias
        out_specs=(o_spec, o_spec, o_spec),
        compiler_params=params,
    )(x2, w_qkv_t, b_qkv)


def _multi_head_attention(q2, k2, v2, mask, B, S, nh, dh, params):
    M, H = q2.shape
    hp = _heads_per_block(nh, dh, H)
    kernel = _make_attention_kernel(1.0 / math.sqrt(dh), dh, hp)
    blk = (S, hp * dh)
    qkv_spec = pl.BlockSpec(blk, lambda b, h: (b, h))
    mask_spec = pl.BlockSpec((None, None, 1, S), lambda b, h: (b, 0, 0, 0))
    return pl.pallas_call(
        kernel,
        out_shape=jax.ShapeDtypeStruct((M, H), q2.dtype),
        grid=(B, nh // hp),
        in_specs=[qkv_spec, qkv_spec, qkv_spec, mask_spec],
        out_specs=pl.BlockSpec(blk, lambda b, h: (b, h)),
        compiler_params=params,
    )(q2, k2, v2, mask)


def _linear_residual_ln(x2, w_t, b, res2, gamma, beta, tm, eps, params):
    M, K = x2.shape
    N = w_t.shape[1]
    kernel = _make_linear_residual_ln_kernel(float(eps))
    return pl.pallas_call(
        kernel,
        out_shape=jax.ShapeDtypeStruct((M, N), res2.dtype),
        grid=(pl.cdiv(M, tm),),
        in_specs=[pl.BlockSpec((tm, K), lambda i: (i, 0)),   # streaming x
                  pl.BlockSpec((K, N), lambda i: (0, 0)),    # resident weight (K, N)
                  pl.BlockSpec((1, N), lambda i: (0, 0)),    # bias
                  pl.BlockSpec((tm, N), lambda i: (i, 0)),   # streaming residual
                  pl.BlockSpec((1, N), lambda i: (0, 0)),    # LN gamma
                  pl.BlockSpec((1, N), lambda i: (0, 0))],   # LN beta
        out_specs=pl.BlockSpec((tm, N), lambda i: (i, 0)),
        compiler_params=params,
    )(x2, w_t, b.reshape(1, N), res2, gamma.reshape(1, N), beta.reshape(1, N))


def _fused_mlp(x2, w1_t, b1, w2_t, b2, gamma, beta, tm, tki, eps, params):
    M, H = x2.shape
    I = w1_t.shape[1]
    kernel = _make_mlp_kernel(float(eps))
    return pl.pallas_call(
        kernel,
        out_shape=jax.ShapeDtypeStruct((M, H), x2.dtype),
        grid=(pl.cdiv(M, tm), I // tki),
        in_specs=[pl.BlockSpec((tm, H), lambda i, k: (i, 0)),    # x / residual
                  pl.BlockSpec((H, tki), lambda i, k: (0, k)),   # W1 chunk
                  pl.BlockSpec((1, tki), lambda i, k: (0, k)),   # b1 chunk
                  pl.BlockSpec((tki, H), lambda i, k: (k, 0)),   # W2 chunk
                  pl.BlockSpec((1, H), lambda i, k: (0, 0)),     # b2
                  pl.BlockSpec((1, H), lambda i, k: (0, 0)),     # LN gamma
                  pl.BlockSpec((1, H), lambda i, k: (0, 0))],    # LN beta
        out_specs=pl.BlockSpec((tm, H), lambda i, k: (i, 0)),
        scratch_shapes=[pltpu.VMEM((tm, H), jnp.float32)],
        compiler_params=params,
    )(x2, w1_t, b1.reshape(1, I), w2_t, b2.reshape(1, H),
      gamma.reshape(1, H), beta.reshape(1, H))


def bert_layer_tucker_vertical_forward(
        hidden_states, attention_mask, query_w, key_w, value_w,
        bias_q, bias_k, bias_v,
        so_w, so_b, so_gamma, so_beta,
        inter_w, inter_b,
        out_w, out_b, out_gamma, out_beta,
        num_heads, eps=1e-12):
    """Full BertLayer_tucker_vertical forward (eval mode, absolute positions)."""
    B, S, H = hidden_states.shape
    nh = num_heads
    dh = H // nh
    M = B * S
    tm = min(M, 512)
    I = inter_w.shape[0]
    tki = _choose_chunk(I)

    vmem = _vmem_limit_bytes()
    p_rows = pltpu.CompilerParams(
        dimension_semantics=("parallel",), vmem_limit_bytes=vmem)
    p_attn = pltpu.CompilerParams(
        dimension_semantics=("parallel", "parallel"), vmem_limit_bytes=vmem)
    p_mlp = pltpu.CompilerParams(
        dimension_semantics=("parallel", "arbitrary"), vmem_limit_bytes=vmem)

    x2 = hidden_states.reshape(M, H)          # free reshape (no transpose)

    # Weight layout plumbing done once outside the kernels: pre-transpose to
    # (K, N) MXU-RHS layout and concatenate Q/K/V into one lane-dense RHS.
    w_qkv_t = jnp.concatenate([query_w.T, key_w.T, value_w.T], axis=1)  # (H, 3H)
    b_qkv = jnp.concatenate([bias_q, bias_k, bias_v]).reshape(1, 3 * H)
    so_w_t = so_w.T                                                      # (H, H)
    inter_w_t = inter_w.T                                                # (H, I)
    out_w_t = out_w.T                                                    # (I, H)

    # 1) fused Q/K/V projection (single matmul, three (M, H) outputs)
    q2, k2, v2 = _qkv_proj(x2, w_qkv_t, b_qkv, tm, p_rows)

    if attention_mask is None:
        attention_mask = jnp.zeros((B, 1, 1, S), dtype=hidden_states.dtype)

    # 2) multi-head attention: heads are sliced straight out of the (M, H)
    #    tensors by the BlockSpecs; ctx is written back in merged-head layout.
    ctx2 = _multi_head_attention(q2, k2, v2, attention_mask, B, S, nh, dh, p_attn)

    # 3) BertSelfOutput: dense + residual(hidden_states) + LayerNorm
    attn_out2 = _linear_residual_ln(ctx2, so_w_t, so_b, x2, so_gamma, so_beta,
                                    tm, eps, p_rows)

    # 4+5) fused BertIntermediate (GELU) + BertOutput (+ residual + LayerNorm)
    layer_out2 = _fused_mlp(attn_out2, inter_w_t, inter_b, out_w_t, out_b,
                            out_gamma, out_beta, tm, tki, eps, p_mlp)

    return layer_out2.reshape(B, S, H)


# ----------------------------- pure-JAX reference -----------------------------


def reference_forward(hidden_states, attention_mask, query_w, key_w, value_w,
                      bias_q, bias_k, bias_v,
                      so_w, so_b, so_gamma, so_beta,
                      inter_w, inter_b,
                      out_w, out_b, out_gamma, out_beta,
                      num_heads, eps=1e-12):
    B, S, H = hidden_states.shape
    nh = num_heads
    dh = H // nh

    def linear(x, w, b):
        return jnp.einsum("bsk,nk->bsn", x, w) + b

    q = linear(hidden_states, query_w, bias_q)
    k = linear(hidden_states, key_w, bias_k)
    v = linear(hidden_states, value_w, bias_v)

    def split(x):
        return x.reshape(B, S, nh, dh).transpose(0, 2, 1, 3)

    qh, kh, vh = split(q), split(k), split(v)
    scores = jnp.einsum("bhqd,bhkd->bhqk", qh, kh) / math.sqrt(dh)
    scores = scores + attention_mask
    probs = jax.nn.softmax(scores, axis=-1)
    ctx = jnp.einsum("bhqk,bhkd->bhqd", probs, vh)
    ctx = ctx.transpose(0, 2, 1, 3).reshape(B, S, H)

    def ln(x, g, b):
        mu = jnp.mean(x, axis=-1, keepdims=True)
        var = jnp.mean((x - mu) ** 2, axis=-1, keepdims=True)
        return (x - mu) * jax.lax.rsqrt(var + eps) * g + b

    attn_out = ln(linear(ctx, so_w, so_b) + hidden_states, so_gamma, so_beta)
    inter = jax.nn.gelu(linear(attn_out, inter_w, inter_b), approximate=True)
    return ln(linear(inter, out_w, out_b) + attn_out, out_gamma, out_beta)


# ----------------------------- test -------------------------------------------


if __name__ == "__main__":
    B, S, H, NH, INTER = 2, 8, 32, 4, 64
    eps = 1e-12
    f32 = jnp.float32

    key = jax.random.PRNGKey(0)
    ks = jax.random.split(key, 17)

    hidden_states = jax.random.normal(ks[0], (B, S, H), dtype=f32)

    # additive attention mask (B, 1, 1, S): batch 1 masks out the last 2 keys
    attention_mask = jnp.zeros((B, 1, 1, S), dtype=f32)
    attention_mask = attention_mask.at[1, :, :, S - 2:].set(-1e9)

    def w(k, shape, scale=0.05):
        return scale * jax.random.normal(k, shape, dtype=f32)

    query_w, key_w, value_w = w(ks[1], (H, H)), w(ks[2], (H, H)), w(ks[3], (H, H))
    bias_q, bias_k, bias_v = w(ks[4], (H,)), w(ks[5], (H,)), w(ks[6], (H,))
    so_w, so_b = w(ks[7], (H, H)), w(ks[8], (H,))
    so_gamma = 1.0 + 0.1 * jax.random.normal(ks[9], (H,), dtype=f32)
    so_beta = 0.1 * jax.random.normal(ks[10], (H,), dtype=f32)
    inter_w, inter_b = w(ks[11], (INTER, H)), w(ks[12], (INTER,))
    out_w, out_b = w(ks[13], (H, INTER)), w(ks[14], (H,))
    out_gamma = 1.0 + 0.1 * jax.random.normal(ks[15], (H,), dtype=f32)
    out_beta = 0.1 * jax.random.normal(ks[16], (H,), dtype=f32)

    out = bert_layer_tucker_vertical_forward(
        hidden_states, attention_mask, query_w, key_w, value_w,
        bias_q, bias_k, bias_v,
        so_w, so_b, so_gamma, so_beta,
        inter_w, inter_b,
        out_w, out_b, out_gamma, out_beta,
        num_heads=NH, eps=eps)
    out = jax.block_until_ready(out)

    ref = reference_forward(
        hidden_states, attention_mask, query_w, key_w, value_w,
        bias_q, bias_k, bias_v,
        so_w, so_b, so_gamma, so_beta,
        inter_w, inter_b,
        out_w, out_b, out_gamma, out_beta,
        num_heads=NH, eps=eps)

    assert out.shape == (B, S, H)
    max_err = jnp.max(jnp.abs(out - ref))
    assert jnp.allclose(out, ref, atol=1e-3, rtol=1e-3), \
        f"mismatch vs reference, max abs err={max_err}"

    print("KERNEL_OK")
</pallas_src>

<mosaic_0001>
module attributes {stable_mosaic.version = 11 : i64} {
  func.func @_qkv_kernel(%arg0: i32, %arg1: memref<16x32xf32, #tpu.memory_space<vmem>>, %arg2: memref<32x96xf32, #tpu.memory_space<vmem>>, %arg3: memref<1x96xf32, #tpu.memory_space<vmem>>, %arg4: memref<16x32xf32, #tpu.memory_space<vmem>>, %arg5: memref<16x32xf32, #tpu.memory_space<vmem>>, %arg6: memref<16x32xf32, #tpu.memory_space<vmem>>) attributes {dimension_semantics = [#tpu.dimension_semantics<parallel>], iteration_bounds = array<i64: 1>, scalar_prefetch = 0 : i64, scratch_operands = 0 : i64, tpu.core_type = #tpu.core_type<tc>, window_params = [{transform_indices = @transform_0, window_bounds = array<i64: 16, 32>}, {pipeline_mode = #tpu.pipeline_mode<synchronous>, transform_indices = @transform_1, window_bounds = array<i64: 32, 96>}, {pipeline_mode = #tpu.pipeline_mode<synchronous>, transform_indices = @transform_2, window_bounds = array<i64: 1, 96>}, {transform_indices = @transform_3, window_bounds = array<i64: 16, 32>}, {transform_indices = @transform_4, window_bounds = array<i64: 16, 32>}, {transform_indices = @transform_5, window_bounds = array<i64: 16, 32>}]} {
    %c0 = arith.constant 0 : index
    %c0_0 = arith.constant 0 : index
    %0 = vector.load %arg1[%c0, %c0_0] : memref<16x32xf32, #tpu.memory_space<vmem>>, vector<16x32xf32>
    %c0_1 = arith.constant 0 : index
    %c0_2 = arith.constant 0 : index
    %1 = vector.load %arg2[%c0_1, %c0_2] : memref<32x96xf32, #tpu.memory_space<vmem>>, vector<32x96xf32>
    %cst = arith.constant dense<0.000000e+00> : vector<16x96xf32>
    %2 = tpu.matmul %0, %1, %cst {dimension_numbers = #tpu.dot_dimension_numbers<[1], [0], [0], [1], [0, 0, 1, 1], [], []>} : vector<16x32xf32>, vector<32x96xf32>, vector<16x96xf32> -> vector<16x96xf32>
    %c0_3 = arith.constant 0 : index
    %c0_4 = arith.constant 0 : index
    %3 = vector.load %arg3[%c0_3, %c0_4] : memref<1x96xf32, #tpu.memory_space<vmem>>, vector<1x96xf32>
    %4 = vector.broadcast %3 : vector<1x96xf32> to vector<16x96xf32>
    %5 = arith.addf %2, %4 : vector<16x96xf32>
    %6 = vector.extract_strided_slice %5 {offsets = [0, 0], sizes = [16, 32], strides = [1, 1]} : vector<16x96xf32> to vector<16x32xf32>
    %c0_5 = arith.constant 0 : index
    %c0_6 = arith.constant 0 : index
    %7 = vector.load %arg4[%c0_5, %c0_6] : memref<16x32xf32, #tpu.memory_space<vmem>>, vector<16x32xf32>
    tpu.vector_store %arg4[%c0_5, %c0_6], %6 {strides = array<i32>} : memref<16x32xf32, #tpu.memory_space<vmem>>, vector<16x32xf32>,
    %8 = vector.extract_strided_slice %5 {offsets = [0, 32], sizes = [16, 32], strides = [1, 1]} : vector<16x96xf32> to vector<16x32xf32>
    %c0_7 = arith.constant 0 : index
    %c0_8 = arith.constant 0 : index
    %9 = vector.load %arg5[%c0_7, %c0_8] : memref<16x32xf32, #tpu.memory_space<vmem>>, vector<16x32xf32>
    tpu.vector_store %arg5[%c0_7, %c0_8], %8 {strides = array<i32>} : memref<16x32xf32, #tpu.memory_space<vmem>>, vector<16x32xf32>,
    %10 = vector.extract_strided_slice %5 {offsets = [0, 64], sizes = [16, 32], strides = [1, 1]} : vector<16x96xf32> to vector<16x32xf32>
    %c0_9 = arith.constant 0 : index
    %c0_10 = arith.constant 0 : index
    %11 = vector.load %arg6[%c0_9, %c0_10] : memref<16x32xf32, #tpu.memory_space<vmem>>, vector<16x32xf32>
    tpu.vector_store %arg6[%c0_9, %c0_10], %10 {strides = array<i32>} : memref<16x32xf32, #tpu.memory_space<vmem>>, vector<16x32xf32>,
    return
  }
  func.func @transform_0(%arg0: i32) -> (i32, i32) {
    %c0_i32 = arith.constant 0 : i32
    %c0_i32_0 = arith.constant 0 : i32
    return %arg0, %c0_i32 : i32, i32
  }
  func.func @transform_1(%arg0: i32) -> (i32, i32) {
    %c0_i32 = arith.constant 0 : i32
    %c0_i32_0 = arith.constant 0 : i32
    %c0_i32_1 = arith.constant 0 : i32
    return %c0_i32, %c0_i32_0 : i32, i32
  }
  func.func @transform_2(%arg0: i32) -> (i32, i32) {
    %c0_i32 = arith.constant 0 : i32
    %c0_i32_0 = arith.constant 0 : i32
    %c0_i32_1 = arith.constant 0 : i32
    return %c0_i32, %c0_i32_0 : i32, i32
  }
  func.func @transform_3(%arg0: i32) -> (i32, i32) {
    %c0_i32 = arith.constant 0 : i32
    %c0_i32_0 = arith.constant 0 : i32
    return %arg0, %c0_i32 : i32, i32
  }
  func.func @transform_4(%arg0: i32) -> (i32, i32) {
    %c0_i32 = arith.constant 0 : i32
    %c0_i32_0 = arith.constant 0 : i32
    return %arg0, %c0_i32 : i32, i32
  }
  func.func @transform_5(%arg0: i32) -> (i32, i32) {
    %c0_i32 = arith.constant 0 : i32
    %c0_i32_0 = arith.constant 0 : i32
    return %arg0, %c0_i32 : i32, i32
  }
}

</mosaic_0001>

<llo_original>
// kernel: tpu_custom_call.1
$region0: #{tpu_custom_call.1}
  #allocation0 [shape = 'u32[]', space=smem, size = 0x4, offset = 0x4, fixed_abs, tag = 'smem constant byte address 0x4 - core index']
  #allocation1 [shape = 'u32[72,128]{1,0:T(1,128)}', space=vmem, size = 0x9000, scoped, tag = 'internal scratch']
  %s0 = inlined_call_operand.hbm [shape: f32[16,32], index: 0, kind: input, shape index: {}]
  %s1 = inlined_call_operand.hbm [shape: f32[32,96], index: 1, kind: input, shape index: {}]
  %s2 = inlined_call_operand.vmem [shape: f32[1,96], index: 2, kind: input, shape index: {}]
  %s3 = inlined_call_operand.hbm [shape: f32[16,32], index: 3, kind: output, shape index: {0}]
  %s4 = inlined_call_operand.hbm [shape: f32[16,32], index: 4, kind: output, shape index: {1}]
  %s5 = inlined_call_operand.hbm [shape: f32[16,32], index: 5, kind: output, shape index: {2}]
  %6 = xla_tuple %s3, %s4, %s5
  %s7 = sld [smem:[#allocation0]]
  $region46: #{tpu_custom_call.1} parent=0
    _
  %s9 = ssub.s32 1, %s7
  %s10 = scalar_select 0, %s9, %s7
  $region1: #{tpu_custom_call.1} parent=0
    #allocation2 [shape = 'u8[8192]{0}', space=vmem, size = 0x2000, scoped, tag = 'input window, operand 0, single buffered']
    #allocation3 [shape = 's32[1]{0}', space=sflag, size = 0x4, scoped, tag = 'scoped memory for tpu_custom_call.1']
    #allocation4 [shape = 's32[1]{0}', space=sflag, size = 0x4, scoped, tag = 'scoped memory for tpu_custom_call.1']
    #allocation5 [shape = 'u8[16384]{0}', space=vmem, size = 0x4000, scoped, tag = 'input window, operand 1, single buffered']
    #allocation6 [shape = 's32[1]{0}', space=sflag, size = 0x4, scoped, tag = 'scoped memory for tpu_custom_call.1']
    #allocation7 [shape = 'u8[8192]{0}', space=vmem, size = 0x2000, scoped, tag = 'output window, operand 0, single buffered']
    #allocation8 [shape = 'u8[8192]{0}', space=vmem, size = 0x2000, scoped, tag = 'output window, operand 1, single buffered']
    #allocation9 [shape = 's32[1]{0}', space=sflag, size = 0x4, scoped, tag = 'scoped memory for tpu_custom_call.1']
    #allocation10 [shape = 'u8[8192]{0}', space=vmem, size = 0x2000, scoped, tag = 'output window, operand 2, single buffered']
    %11 = vsyncpa [#allocation3], 0
    %12 = vsyncpa [#allocation6], 0
    %13 = vsyncpa [#allocation4], 0
    %14 = vsyncpa [#allocation9], 0
    // Predicated region
    $region2: #{tpu_custom_call.1} parent=1 // pred_check
      _
    $region3: #{tpu_custom_call.1} parent=1 // pred_check_branch
      %16 = sbr.rel (0) target = $region5
    $region4: #{tpu_custom_call.1} parent=1 // pred_region
      %18 = vsyncadd [#allocation3], 0
      %s19 = sshll.u32 %s0, 4
      %s20 = int_to_ptr.hbm [resolvable:$true] %s19
      %s21 = sshll.u32 [#allocation2], 4
      %s22 = int_to_ptr.vmem [resolvable:$true] %s21
      %27 = dma.hbm_to_vmem [thread:$0]  %s20, 256, %s22, [#allocation3], 128, 128, 8
    $region5: #{tpu_custom_call.1} parent=1 // pred_fallthru
      _
    // Predicated region
    $region6: #{tpu_custom_call.1} parent=1 // pred_check
      _
    $region7: #{tpu_custom_call.1} parent=1 // pred_check_branch
      %29 = sbr.rel (0) target = $region9
    $region8: #{tpu_custom_call.1} parent=1 // pred_region
      %31 = vsyncadd [#allocation6], 0
      %s32 = sshll.u32 %s1, 4
      %s33 = int_to_ptr.hbm [resolvable:$true] %s32
      %s34 = sshll.u32 [#allocation5], 4
      %s35 = int_to_ptr.vmem [resolvable:$true] %s34
      %40 = dma.hbm_to_vmem [thread:$0]  %s33, 512, %s35, [#allocation6], 128, 128, 8
    $region9: #{tpu_custom_call.1} parent=1 // pred_fallthru
      _
    // Predicated region
    $region10: #{tpu_custom_call.1} parent=1 // pred_check
      _
    $region11: #{tpu_custom_call.1} parent=1 // pred_check_branch
      %42 = sbr.rel (0) target = $region13
    $region12: #{tpu_custom_call.1} parent=1 // pred_region
      _
    $region13: #{tpu_custom_call.1} parent=1 // pred_fallthru
      _
    // Predicated region
    $region14: #{tpu_custom_call.1} parent=1 // pred_check
      _
    $region15: #{tpu_custom_call.1} parent=1 // pred_check_branch
      %44 = sbr.rel (0) target = $region17
    $region16: #{tpu_custom_call.1} parent=1 // pred_region
      %46 = dma.done [#allocation3], 256
    $region17: #{tpu_custom_call.1} parent=1 // pred_fallthru
      _
    // Predicated region
    $region18: #{tpu_custom_call.1} parent=1 // pred_check
      _
    $region19: #{tpu_custom_call.1} parent=1 // pred_check_branch
      %48 = sbr.rel (0) target = $region21
    $region20: #{tpu_custom_call.1} parent=1 // pred_region
      %50 = dma.done [#allocation6], 512
    $region21: #{tpu_custom_call.1} parent=1 // pred_fallthru
      _
    %v51 = vld [vmem:[#allocation2] sm:$0xff]
    %v52 = vld [vmem:[#allocation2 + $0x8] sm:$0xff]
    %v53 = vld [vmem:[#allocation5] sm:$0xff]
    %v54 = vld [vmem:[#allocation5 + $0x8] sm:$0xff]
    %v55 = vld [vmem:[#allocation5 + $0x10] sm:$0xff]
    %v56 = vld [vmem:[#allocation5 + $0x18] sm:$0xff]
    %v57 = vld [vmem:[%s2] sm:$0x1]
    %v59 = vperm.slane %v57, 0
    %vm61 = vcmask 261120
    %v63 = vsel %vm61, %v51, 0
    %v66 = vsel %vm61, %v52, 0
    %68 = vmatpush.msra.mxu0 0.0
    %69 = vmatpush.msra.mxu0 0.0
    %70 = vmatpush.msra.mxu0 0.0
    %71 = vmatpush.msra.mxu0 0.0
    %72 = vmatpush.msra.mxu0 0.0
    %73 = vmatpush.msra.mxu0 0.0
    %74 = vmatpush.msra.mxu0 0.0
    %75 = vmatpush.msra.mxu0 0.0
    %76 = vmatpush.msra.mxu0 0.0
    %77 = vmatpush.msra.mxu0 0.0
    %78 = vmatpush.msra.mxu0 0.0
    %79 = vmatpush.msra.mxu0 0.0
    %80 = vmatpush.msra.mxu0 %v56
    %81 = vmatpush.msra.mxu0 %v55
    %82 = vmatpush.msra.mxu0 %v54
    %83 = vmatpush.msra.mxu0 %v53
    %84 = vmatmul.f32.gmra.mxu0 %v63
    %v85 = vpop.f32.mrf.mxu0
    %v86 = vadd.f32 %v59, %v85
    %87 = vmatmul.f32.gmra.mxu0 %v66
    %v88 = vpop.f32.mrf.mxu0
    %v89 = vadd.f32 %v59, %v88
    %90 = vdwg.mxu0
    %91 = vst.msk [vmem:[#allocation7] sm:$0xff] %vm61, %v86
    %92 = vst.msk [vmem:[#allocation7 + $0x8] sm:$0xff] %vm61, %v89
    %95 = vrot.lane.b32.xlu0 %v86, 96
    %v96 = vpop.permute.xlu0 %95
    %97 = vrot.lane.b32.xlu0 %v89, 96
    %v98 = vpop.permute.xlu0 %97
    %101 = vst.msk [vmem:[#allocation8] sm:$0xff] %vm61, %v96
    %102 = vst.msk [vmem:[#allocation8 + $0x8] sm:$0xff] %vm61, %v98
    %103 = vrot.lane.b32.xlu0 %v86, 64
    %v104 = vpop.permute.xlu0 %103
    %105 = vrot.lane.b32.xlu0 %v89, 64
    %v106 = vpop.permute.xlu0 %105
    %109 = vst.msk [vmem:[#allocation10] sm:$0xff] %vm61, %v104
    %110 = vst.msk [vmem:[#allocation10 + $0x8] sm:$0xff] %vm61, %v106
    // Predicated region
    $region22: #{tpu_custom_call.1} parent=1 // pred_check
      _
    $region23: #{tpu_custom_call.1} parent=1 // pred_check_branch
      %112 = sbr.rel (0) target = $region25
    $region24: #{tpu_custom_call.1} parent=1 // pred_region
      %114 = vsyncadd [#allocation4], 0
      %s115 = sshll.u32 [#allocation7], 4
      %s116 = int_to_ptr.vmem [resolvable:$true] %s115
      %s117 = sshll.u32 %s3, 4
      %s118 = int_to_ptr.hbm [resolvable:$true] %s117
      %123 = dma.vmem_to_hbm [thread:$0]  %s116, 256, %s118, [#allocation4], 128, 128, 8
    $region25: #{tpu_custom_call.1} parent=1 // pred_fallthru
      _
    // Predicated region
    $region26: #{tpu_custom_call.1} parent=1 // pred_check
      _
    $region27: #{tpu_custom_call.1} parent=1 // pred_check_branch
      %125 = sbr.rel (0) target = $region29
    $region28: #{tpu_custom_call.1} parent=1 // pred_region
      %127 = vsyncadd [#allocation9], 0
      %s128 = sshll.u32 [#allocation8], 4
      %s129 = int_to_ptr.vmem [resolvable:$true] %s128
      %s130 = sshll.u32 %s4, 4
      %s131 = int_to_ptr.hbm [resolvable:$true] %s130
      %136 = dma.vmem_to_hbm [thread:$0]  %s129, 256, %s131, [#allocation9], 128, 128, 8
    $region29: #{tpu_custom_call.1} parent=1 // pred_fallthru
      _
    // Predicated region
    $region30: #{tpu_custom_call.1} parent=1 // pred_check
      _
    $region31: #{tpu_custom_call.1} parent=1 // pred_check_branch
      %138 = sbr.rel (0) target = $region33
    $region32: #{tpu_custom_call.1} parent=1 // pred_region
      %140 = vsyncadd [#allocation9], 0
      %s141 = sshll.u32 [#allocation10], 4
      %s142 = int_to_ptr.vmem [resolvable:$true] %s141
      %s143 = sshll.u32 %s5, 4
      %s144 = int_to_ptr.hbm [resolvable:$true] %s143
      %149 = dma.vmem_to_hbm [thread:$0]  %s142, 256, %s144, [#allocation9], 128, 128, 8
    $region33: #{tpu_custom_call.1} parent=1 // pred_fallthru
      _
    // Predicated region
    $region34: #{tpu_custom_call.1} parent=1 // pred_check
      _
    $region35: #{tpu_custom_call.1} parent=1 // pred_check_branch
      %151 = sbr.rel (0) target = $region37
    $region36: #{tpu_custom_call.1} parent=1 // pred_region
      %153 = dma.done [#allocation4], 256
    $region37: #{tpu_custom_call.1} parent=1 // pred_fallthru
      _
    // Predicated region
    $region38: #{tpu_custom_call.1} parent=1 // pred_check
      _
    $region39: #{tpu_custom_call.1} parent=1 // pred_check_branch
      %155 = sbr.rel (0) target = $region41
    $region40: #{tpu_custom_call.1} parent=1 // pred_region
      %157 = dma.done [#allocation9], 256
    $region41: #{tpu_custom_call.1} parent=1 // pred_fallthru
      _
    // Predicated region
    $region42: #{tpu_custom_call.1} parent=1 // pred_check
      _
    $region43: #{tpu_custom_call.1} parent=1 // pred_check_branch
      %159 = sbr.rel (0) target = $region45
    $region44: #{tpu_custom_call.1} parent=1 // pred_region
      %161 = dma.done [#allocation9], 256
    $region45: #{tpu_custom_call.1} parent=1 // pred_fallthru
      _
    %162 = vsyncpa [#allocation3], 1
    %163 = vsyncpa [#allocation6], 1
    %164 = vsyncpa [#allocation4], 1
    %165 = vsyncpa [#allocation9], 1

</llo_original>
